<compile_context>
chip_gen: v6e
topology: v6e:2x2x1
jax: 0.10.0
libtpu: 0.0.40
codegen_flags: <defaults>
</compile_context>

<pallas_src>
import jax
import jax.numpy as jnp
from jax import lax
from jax.experimental import pallas as pl
from jax.experimental.pallas import tpu as pltpu

IMG = 20                     # input spatial size (20x20, 1 channel)
KSZ = 5                      # conv kernel size
C1 = 20                      # conv1 out channels (real)
C2 = 20                      # conv2 out channels (real)
C1P = 32                     # conv channels padded to a sublane-aligned 32
C2P = 32
OH1 = IMG - KSZ + 1          # 16
OH2 = OH1 - KSZ + 1          # 12
HID = 50                     # hidden size of first Linear
HIDP = 64                    # padded hidden size
FLAT = C2 * OH2 * OH2        # 2880 = torch flatten size
LANES = 512                  # padded flat spatial width (row stride stays IMG=20)
K1P = 32                     # conv1 contraction: 25 -> 32
K2 = KSZ * KSZ * C1P         # conv2 contraction: 800 (offset-major, 32-ch blocks)
K2P = 896                    # 800 -> 896 (multiple of 128)
LIN_COLS = 256               # lin1 reads the first 256 lanes (valid end at 231)

# ---- static invariants the review asked to pin (roll wraparound safety etc.) ----
_MAX_SHIFT = (KSZ - 1) * (IMG + 1)          # 84: largest im2col lane shift
_LAST_A1_LANE = (OH1 - 1) * (IMG + 1)       # 315: last conv1-output lane consumed
_LAST_A2_LANE = (OH2 - 1) * (IMG + 1)       # 231: last conv2-output lane consumed
assert IMG * IMG <= LANES
assert _LAST_A1_LANE + _MAX_SHIFT < IMG * IMG        # conv1 taps read only real pixels
assert _LAST_A2_LANE + _MAX_SHIFT <= _LAST_A1_LANE   # conv2 taps read valid conv1 lanes
assert LANES - _MAX_SHIFT > _LAST_A1_LANE            # roll wrap never hits consumed lanes
assert LANES - _MAX_SHIFT > _LAST_A2_LANE
assert _LAST_A2_LANE < LIN_COLS and OH2 * IMG <= LIN_COLS
assert C1P % 16 == 0 and C2P % 16 == 0 and K2 % 32 == 0
assert LANES % 128 == 0 and K2P % 128 == 0 and LIN_COLS % 128 == 0


def _detect_np_roll_semantics() -> bool:
    """One-time 1-vreg probe: does pltpu.roll follow np.roll (out[i]=in[i-shift])?"""
    def k(x_ref, o_ref):
        o_ref[...] = pltpu.roll(x_ref[...], shift=1, axis=1)

    x = (jnp.arange(8 * 128, dtype=jnp.float32) + 1.0).reshape(8, 128)
    y = pl.pallas_call(
        k,
        out_shape=jax.ShapeDtypeStruct((8, 128), jnp.float32),
        in_specs=[pl.BlockSpec(memory_space=pltpu.MemorySpace.VMEM)],
        out_specs=pl.BlockSpec(memory_space=pltpu.MemorySpace.VMEM),
    )(x)
    return bool(y[0, 1] == x[0, 0])


def build_forward(np_roll_semantics: bool):
    """Builds the jitted fused forward, closing over the roll sign convention."""

    def shift_left(x, d):
        # out[:, p] = x[:, p + d]; one XLU lane rotation.  Wraparound only ever
        # lands in lanes that are never consumed downstream (module asserts).
        if d == 0:
            return x
        s = (LANES - d) if np_roll_semantics else d
        return pltpu.roll(x, shift=s, axis=1)

    def kernel(x_ref, w1_ref, b1_ref, w2_ref, b2_ref,
               wl1_ref, bl1_ref, wl2_ref, bl2_ref, out_ref):
        xflat = x_ref[...]                                          # (1, 512) f32

        # ---- conv1: in-register im2col (25 lane rolls) -> one MXU matmul ----
        rows = [shift_left(xflat, i * IMG + j)
                for i in range(KSZ) for j in range(KSZ)]            # 25 x (1, 512)
        rows.append(jnp.zeros((K1P - KSZ * KSZ, LANES), jnp.float32))
        p1 = jnp.concatenate(rows, axis=0).astype(jnp.bfloat16)     # (32, 512)
        a1 = jnp.dot(w1_ref[...], p1, preferred_element_type=jnp.float32)
        a1 = jnp.maximum(a1 + b1_ref[...], 0.0)                     # (32, 512) f32

        # ---- conv2: same trick on sublane-aligned (32, 512) blocks ----
        blocks = [shift_left(a1, i * IMG + j).astype(jnp.bfloat16)
                  for i in range(KSZ) for j in range(KSZ)]          # 25 x (32, 512)
        blocks.append(jnp.zeros((K2P - K2, LANES), jnp.bfloat16))
        p2 = jnp.concatenate(blocks, axis=0)                        # (896, 512) bf16
        a2 = jnp.dot(w2_ref[...], p2, preferred_element_type=jnp.float32)
        a2 = jnp.maximum(a2 + b2_ref[...], 0.0)                     # (32, 512) f32

        # ---- linear1: 20 independent (1,256)@(256,64) dots, reduced once ----
        a2v = a2[:, :LIN_COLS]                                      # (32, 256) f32
        parts = [jnp.dot(a2v[c:c + 1, :].astype(jnp.bfloat16), wl1_ref[c],
                         preferred_element_type=jnp.float32)
                 for c in range(C2)]                                # 20 x (1, 64)
        hc = jnp.concatenate(parts, axis=0)                         # (20, 64)
        h = jnp.maximum(jnp.sum(hc, axis=0, keepdims=True) + bl1_ref[...], 0.0)

        # ---- linear2 + sigmoid; only this (1, 1) scalar leaves VMEM ----
        logit = jnp.sum(h * wl2_ref[...], axis=1, keepdims=True) + bl2_ref[...]
        out_ref[...] = 1.0 / (1.0 + jnp.exp(-logit))

    @jax.jit
    def forward(x, packed):
        xflat = x.reshape(1, IMG * IMG)
        xflat = jnp.pad(xflat, ((0, 0), (0, LANES - IMG * IMG)))    # (1, 512)
        return pl.pallas_call(
            kernel,
            out_shape=jax.ShapeDtypeStruct((1, 1), jnp.float32),
            in_specs=[pl.BlockSpec(memory_space=pltpu.MemorySpace.VMEM)] * 9,
            out_specs=pl.BlockSpec(memory_space=pltpu.MemorySpace.VMEM),
        )(xflat, packed["w1"], packed["b1"], packed["w2"], packed["b2"],
          packed["wl1"], packed["bl1"], packed["wl2"], packed["bl2"])

    return forward


def pack_params(p):
    """One-time repack of PyTorch-layout weights into the kernel's layouts.
    Matmul operands are stored in bfloat16 (MXU-native on v6e/v7x); biases and
    the tiny final linear stay float32 (all accumulation is f32)."""
    bf16, f32 = jnp.bfloat16, jnp.float32
    # conv1: (20,1,5,5) -> (32, 32); rows = out ch (pad 20->32), cols r = i*5+j.
    w1 = p["w_conv1"].reshape(C1, KSZ * KSZ)
    w1 = jnp.pad(w1, ((0, C1P - C1), (0, K1P - KSZ * KSZ))).astype(bf16)
    b1 = jnp.pad(p["b_conv1"], (0, C1P - C1)).reshape(C1P, 1).astype(f32)
    # conv2: (20,20,5,5) -> (32, 896); col k = (i*5+j)*32 + c_in (offset-major).
    w2 = jnp.transpose(p["w_conv2"], (0, 2, 3, 1))                  # (o, i, j, c)
    w2 = jnp.pad(w2, ((0, C2P - C2), (0, 0), (0, 0), (0, C1P - C1)))
    w2 = w2.reshape(C2P, K2)
    w2 = jnp.pad(w2, ((0, 0), (0, K2P - K2))).astype(bf16)
    b2 = jnp.pad(p["b_conv2"], (0, C2P - C2)).reshape(C2P, 1).astype(f32)
    # linear1: torch's x.view(-1, 2880) order (c, y, x) pre-folded into
    # (channel, conv2-lane y*20+x, hidden) matching the activation lane layout.
    wl1 = p["w_lin1"].reshape(HID, C2, OH2, OH2)
    wl1 = jnp.pad(wl1, ((0, HIDP - HID), (0, 0), (0, 0), (0, IMG - OH2)))
    wl1 = jnp.transpose(wl1, (1, 2, 3, 0)).reshape(C2, OH2 * IMG, HIDP)
    wl1 = jnp.pad(wl1, ((0, 0), (0, LIN_COLS - OH2 * IMG), (0, 0))).astype(bf16)
    bl1 = jnp.pad(p["b_lin1"], (0, HIDP - HID)).reshape(1, HIDP).astype(f32)
    wl2 = jnp.pad(p["w_lin2"], ((0, 0), (0, HIDP - HID))).astype(f32)
    bl2 = p["b_lin2"].reshape(1, 1).astype(f32)
    return {"w1": w1, "b1": b1, "w2": w2, "b2": b2,
            "wl1": wl1, "bl1": bl1, "wl2": wl2, "bl2": bl2}


def init_params(key):
    ks = jax.random.split(key, 8)
    s = 0.05
    return {
        "w_conv1": s * jax.random.normal(ks[0], (C1, 1, KSZ, KSZ), jnp.float32),
        "b_conv1": s * jax.random.normal(ks[1], (C1,), jnp.float32),
        "w_conv2": s * jax.random.normal(ks[2], (C2, C1, KSZ, KSZ), jnp.float32),
        "b_conv2": s * jax.random.normal(ks[3], (C2,), jnp.float32),
        "w_lin1":  s * jax.random.normal(ks[4], (HID, FLAT), jnp.float32),
        "b_lin1":  s * jax.random.normal(ks[5], (HID,), jnp.float32),
        "w_lin2":  s * jax.random.normal(ks[6], (1, HID), jnp.float32),
        "b_lin2":  s * jax.random.normal(ks[7], (1,), jnp.float32),
    }


def reference_forward(x, p):
    """Pure-JAX f32 reference (matches the PyTorch module) for correctness."""
    dn = ("NCHW", "OIHW", "NCHW")
    hp = lax.Precision.HIGHEST
    a = lax.conv_general_dilated(x, p["w_conv1"], (1, 1), "VALID",
                                 dimension_numbers=dn, precision=hp)
    a = jnp.maximum(a + p["b_conv1"].reshape(1, -1, 1, 1), 0.0)
    a = lax.conv_general_dilated(a, p["w_conv2"], (1, 1), "VALID",
                                 dimension_numbers=dn, precision=hp)
    a = jnp.maximum(a + p["b_conv2"].reshape(1, -1, 1, 1), 0.0)
    flat = a.reshape(1, -1)
    h = jnp.maximum(jnp.dot(flat, p["w_lin1"].T, precision=hp)
                    + p["b_lin1"][None, :], 0.0)
    z = jnp.dot(h, p["w_lin2"].T, precision=hp) + p["b_lin2"][None, :]
    return jax.nn.sigmoid(z)


# TODO(synk): Model.fit (Adam + BCELoss training loop) is training, not part of
# the forward pass, and is not implemented.

if __name__ == "__main__":
    key = jax.random.PRNGKey(0)
    k_x, k_p = jax.random.split(key)
    # 20x20 single-channel image, batch 1: two valid 5x5 convs -> 12x12 and
    # 20*12*12 = 2880 = Linear in_features, the shape the module implies.
    x = jax.random.normal(k_x, (1, 1, IMG, IMG), jnp.float32)
    params = init_params(k_p)
    packed = pack_params(params)            # one-time weight repack (outside jit)

    fwd = build_forward(_detect_np_roll_semantics())
    out = jax.block_until_ready(fwd(x, packed))
    assert out.shape == (1, 1)

    ref = jax.block_until_ready(reference_forward(x, params))
    # Tolerance accounts for bf16 MXU operands (f32 accumulation); any layout /
    # roll-direction bug would miss by orders of magnitude more than this.
    assert jnp.allclose(out, ref, atol=2e-3, rtol=1e-2), (out, ref)
    print("KERNEL_OK")
</pallas_src>

<mosaic_0001>
module attributes {stable_mosaic.version = 11 : i64} {
  func.func @k(%arg0: memref<8x128xf32, #tpu.memory_space<vmem>>, %arg1: memref<8x128xf32, #tpu.memory_space<vmem>>) attributes {dimension_semantics = [], scalar_prefetch = 0 : i64, scratch_operands = 0 : i64, tpu.core_type = #tpu.core_type<tc>} {
    %c0 = arith.constant 0 : index
    %c0_0 = arith.constant 0 : index
    %0 = vector.load %arg0[%c0, %c0_0] : memref<8x128xf32, #tpu.memory_space<vmem>>, vector<8x128xf32>
    %c1_i32 = arith.constant 1 : i32
    %1 = tpu.dynamic_rotate %0 by %c1_i32 dim 1 : vector<8x128xf32>, i32 -> vector<8x128xf32>
    %c0_1 = arith.constant 0 : index
    %c0_2 = arith.constant 0 : index
    %2 = vector.load %arg1[%c0_1, %c0_2] : memref<8x128xf32, #tpu.memory_space<vmem>>, vector<8x128xf32>
    tpu.vector_store %arg1[%c0_1, %c0_2], %1 {strides = array<i32>} : memref<8x128xf32, #tpu.memory_space<vmem>>, vector<8x128xf32>,
    return
  }
}

</mosaic_0001>

<llo_original>
// kernel: tpu_custom_call.1
$region0: #{tpu_custom_call.1}
  #allocation0 [shape = 'u32[]', space=smem, size = 0x4, offset = 0x4, fixed_abs, tag = 'smem constant byte address 0x4 - core index']
  #allocation1 [shape = 'u32[144,128]{1,0:T(1,128)}', space=vmem, size = 0x12000, scoped, tag = 'internal scratch']
  %s0 = inlined_call_operand.hbm [shape: f32[8,128], index: 0, kind: input, shape index: {}]
  %s1 = inlined_call_operand.hbm [shape: f32[8,128], index: 1, kind: output, shape index: {}]
  %s2 = sld [smem:[#allocation0]]
  $region18: #{tpu_custom_call.1} parent=0
    _
  %s4 = ssub.s32 1, %s2
  %s5 = scalar_select 0, %s4, %s2
  $region1: #{tpu_custom_call.1} parent=0
    #allocation2 [shape = 'u8[4096]{0}', space=vmem, size = 0x1000, scoped, tag = 'input window, operand 0, single buffered']
    #allocation3 [shape = 's32[1]{0}', space=sflag, size = 0x4, scoped, tag = 'scoped memory for tpu_custom_call.1']
    #allocation4 [shape = 's32[1]{0}', space=sflag, size = 0x4, scoped, tag = 'scoped memory for tpu_custom_call.1']
    #allocation5 [shape = 'u8[4096]{0}', space=vmem, size = 0x1000, scoped, tag = 'output window, operand 0, single buffered']
    %6 = vsyncpa [#allocation3], 0
    %7 = vsyncpa [#allocation4], 0
    // Predicated region
    $region2: #{tpu_custom_call.1} parent=1 // pred_check
      _
    $region3: #{tpu_custom_call.1} parent=1 // pred_check_branch
      %9 = sbr.rel (0) target = $region5
    $region4: #{tpu_custom_call.1} parent=1 // pred_region
      %s11 = ssub.s32 128, 128
      %12 = vsyncadd [#allocation3], %s11
      %s14 = sshll.u32 [#allocation2], 4
      %s15 = int_to_ptr.vmem [resolvable:$true] %s14
      %17 = dma.hbm_to_vmem [thread:$0]  %s0, 128, %s15, [#allocation3]
    $region5: #{tpu_custom_call.1} parent=1 // pred_fallthru
      _
    // Predicated region
    $region6: #{tpu_custom_call.1} parent=1 // pred_check
      _
    $region7: #{tpu_custom_call.1} parent=1 // pred_check_branch
      %19 = sbr.rel (0) target = $region9
    $region8: #{tpu_custom_call.1} parent=1 // pred_region
      %20 = dma.done [#allocation3], 128
    $region9: #{tpu_custom_call.1} parent=1 // pred_fallthru
      _
    %v21 = vld [vmem:[#allocation2] sm:$0xff]
    %22 = vrot.lane.b32.xlu0 %v21, 1
    %v23 = vpop.permute.xlu0 %22
    %24 = vst [vmem:[#allocation5] sm:$0xff] %v23
    // Predicated region
    $region10: #{tpu_custom_call.1} parent=1 // pred_check
      _
    $region11: #{tpu_custom_call.1} parent=1 // pred_check_branch
      %26 = sbr.rel (0) target = $region13
    $region12: #{tpu_custom_call.1} parent=1 // pred_region
      %s28 = ssub.s32 128, 128
      %29 = vsyncadd [#allocation4], %s28
      %s31 = sshll.u32 [#allocation5], 4
      %s32 = int_to_ptr.vmem [resolvable:$true] %s31
      %34 = dma.vmem_to_hbm [thread:$0]  %s32, 128, %s1, [#allocation4]
    $region13: #{tpu_custom_call.1} parent=1 // pred_fallthru
      _
    // Predicated region
    $region14: #{tpu_custom_call.1} parent=1 // pred_check
      _
    $region15: #{tpu_custom_call.1} parent=1 // pred_check_branch
      %36 = sbr.rel (0) target = $region17
    $region16: #{tpu_custom_call.1} parent=1 // pred_region
      %37 = dma.done [#allocation4], 128
    $region17: #{tpu_custom_call.1} parent=1 // pred_fallthru
      _
    %38 = vsyncpa [#allocation3], 1
    %39 = vsyncpa [#allocation4], 1

</llo_original>
